<compile_context>
chip_gen: v5e
topology: v5e:2x2
jax: 0.10.0
libtpu: 0.0.40
codegen_flags: <defaults>
</compile_context>

<pallas_src>
import functools
import math

import jax
import jax.numpy as jnp
from jax.experimental import pallas as pl
from jax.experimental.pallas import tpu as pltpu


def _round_up(a, b):
    return ((a + b - 1) // b) * b


def _sumsq_operands(x_ref, use_hi_lo):
    """bf16 operand(s) for the sum-of-squares matmul (single pass for bf16 x)."""
    if use_hi_lo:
        xf = x_ref[...].astype(jnp.float32)
        xsq = xf * xf
        hi = xsq.astype(jnp.bfloat16)
        lo = (xsq - hi.astype(jnp.float32)).astype(jnp.bfloat16)
        return (hi, lo)
    xb = x_ref[...]
    return ((xb * xb).astype(jnp.bfloat16),)


def _mh_rmsnorm_blockdiag_kernel(x_ref, g_ref, m_ref, o_ref, *, eps_sq, use_hi_lo):
    # x_ref: (tn, HD); g_ref: (1, HD) f32 gamma*sqrt(dim);
    # m_ref: (HD, HD) bf16 block-diagonal 0/1; o_ref: (tn, HD).
    m = m_ref[...]
    ops = _sumsq_operands(x_ref, use_hi_lo)
    sumsq = jnp.dot(ops[0], m, preferred_element_type=jnp.float32)
    for extra in ops[1:]:
        sumsq = sumsq + jnp.dot(extra, m, preferred_element_type=jnp.float32)
    # max(||x||, eps) == sqrt(max(sum(x^2), eps^2)); rsqrt runs on the EUP.
    inv = jax.lax.rsqrt(jnp.maximum(sumsq, eps_sq))
    # Re-read x (instead of keeping an f32 upcast live across the dot).
    o_ref[...] = (x_ref[...].astype(jnp.float32) * (inv * g_ref[...])).astype(o_ref.dtype)


def _mh_rmsnorm_reduce_kernel(x_ref, g_ref, r_ref, b_ref, o_ref, *, eps_sq, use_hi_lo):
    # Large-HD path: x_ref: (tn, HD); r_ref: (HD, H) one-hot reduce (bf16);
    # b_ref: (H, HD) one-hot broadcast (bf16); g_ref: (1, HD); o_ref: (tn, HD).
    r = r_ref[...]
    ops = _sumsq_operands(x_ref, use_hi_lo)
    sumsq_h = jnp.dot(ops[0], r, preferred_element_type=jnp.float32)
    for extra in ops[1:]:
        sumsq_h = sumsq_h + jnp.dot(extra, r, preferred_element_type=jnp.float32)
    inv_h = jax.lax.rsqrt(jnp.maximum(sumsq_h, eps_sq))           # (tn, H) f32
    b = b_ref[...]
    if use_hi_lo:
        ih = inv_h.astype(jnp.bfloat16)
        il = (inv_h - ih.astype(jnp.float32)).astype(jnp.bfloat16)
        inv = (jnp.dot(ih, b, preferred_element_type=jnp.float32)
               + jnp.dot(il, b, preferred_element_type=jnp.float32))
    else:
        inv = jnp.dot(inv_h.astype(jnp.bfloat16), b, preferred_element_type=jnp.float32)
    o_ref[...] = (x_ref[...].astype(jnp.float32) * (inv * g_ref[...])).astype(o_ref.dtype)


@functools.lru_cache(maxsize=None)
def _blockdiag_mask(heads, dim):
    hd = heads * dim
    head_id = jnp.arange(hd, dtype=jnp.int32) // dim
    return (head_id[:, None] == head_id[None, :]).astype(jnp.bfloat16)    # (hd, hd)


@functools.lru_cache(maxsize=None)
def _onehot_matrices(heads, dim):
    hd = heads * dim
    head_id = jnp.arange(hd, dtype=jnp.int32) // dim
    hid = jnp.arange(heads, dtype=jnp.int32)
    reduce_m = (head_id[:, None] == hid[None, :]).astype(jnp.bfloat16)    # (hd, heads)
    bcast_m = (hid[:, None] == head_id[None, :]).astype(jnp.bfloat16)     # (heads, hd)
    return reduce_m, bcast_m


def _vmem_budget():
    """(target input-block bytes, vmem_limit_bytes), sized per TPU generation."""
    try:
        cap = int(pltpu.get_tpu_info().vmem_capacity_bytes)
    except Exception:
        cap = 64 * 1024 * 1024
    if cap >= 96 * 1024 * 1024:          # v5e / v6e: 128 MiB physical VMEM
        return 4 << 20, 64 << 20
    return 2 << 20, 32 << 20             # v7x: 64 MiB physical VMEM


def multi_head_rms_norm(x, gamma, *, eps=1e-12, target_block_bytes=None,
                        vmem_limit_bytes=None):
    """x: [..., heads, dim]; gamma: [heads, dim]. Returns same shape/dtype as x."""
    orig_shape = x.shape
    orig_dtype = x.dtype
    heads, dim = gamma.shape
    assert x.shape[-2:] == (heads, dim), "x must end in (heads, dim)"

    hd = heads * dim
    n = 1
    for s in orig_shape[:-2]:
        n *= s
    assert n > 0, "empty input"

    auto_block, auto_vmem = _vmem_budget()
    if target_block_bytes is None:
        target_block_bytes = auto_block
    if vmem_limit_bytes is None:
        vmem_limit_bytes = auto_vmem

    # Lane-dense layout: flatten (heads, dim) into one trailing axis.  The two
    # trailing dims are contiguous so this reshape is free (no HBM copy).
    # TODO(synk): if heads*dim is not a multiple of 128 the output stores are
    # masked (vst.msk); padding would fix that but costs an extra HBM pass on a
    # memory-bound kernel, so it is intentionally not done here.
    x2 = x.reshape(n, hd)

    # Pre-fold sqrt(dim) into gamma once (tiny), flattened to one broadcast row.
    gamma_scaled = (gamma.astype(jnp.float32) * math.sqrt(dim)).reshape(1, hd)

    # bf16 inputs: single bf16 MXU pass; wider inputs keep a hi/lo split for
    # f32-level accuracy through the bf16 MXU.
    use_hi_lo = jnp.dtype(orig_dtype) != jnp.dtype(jnp.bfloat16)

    itemsize = jnp.dtype(orig_dtype).itemsize
    sub = 8 * max(1, 4 // itemsize)      # native sublane tiling: f32=8, bf16=16, 8-bit=32

    # Row tile: ~target_block_bytes of input per step, rounded to the sublane
    # multiple, but keep >= ~8 grid steps when the row count allows it
    # (software pipelining + dual-TC sharding of the "parallel" axis on v7x).
    tn = max(sub, (target_block_bytes // max(1, hd * itemsize)) // sub * sub)
    tn = min(tn, max(sub, _round_up(pl.cdiv(n, 8), sub)))
    if tn >= n:
        tn = n                           # tiny input: one full-extent block (legal)
    grid = (pl.cdiv(n, tn),)             # partial last block: OOB writes dropped

    eps_sq = float(eps) ** 2
    common_specs = [
        pl.BlockSpec((tn, hd), lambda i: (i, 0)),
        pl.BlockSpec((1, hd), lambda i: (0, 0)),
    ]

    if hd < 512:
        # O(HD^2) block-diagonal reduction: one dot yields the per-lane
        # (already broadcast) per-head sum of squares.
        kernel = functools.partial(_mh_rmsnorm_blockdiag_kernel,
                                   eps_sq=eps_sq, use_hi_lo=use_hi_lo)
        consts = (_blockdiag_mask(heads, dim),)
        const_specs = [pl.BlockSpec((hd, hd), lambda i: (0, 0))]
    else:
        # O(heads*HD) reduce + broadcast: small constants, small rsqrt,
        # gamma scale applied after the exact 0/1 broadcast dot.
        kernel = functools.partial(_mh_rmsnorm_reduce_kernel,
                                   eps_sq=eps_sq, use_hi_lo=use_hi_lo)
        reduce_m, bcast_m = _onehot_matrices(heads, dim)
        consts = (reduce_m, bcast_m)
        const_specs = [pl.BlockSpec((hd, heads), lambda i: (0, 0)),
                       pl.BlockSpec((heads, hd), lambda i: (0, 0))]

    out = pl.pallas_call(
        kernel,
        out_shape=jax.ShapeDtypeStruct((n, hd), orig_dtype),
        grid_spec=pltpu.PrefetchScalarGridSpec(
            num_scalar_prefetch=0,
            grid=grid,
            in_specs=common_specs + const_specs,
            out_specs=pl.BlockSpec((tn, hd), lambda i: (i, 0)),
        ),
        compiler_params=pltpu.CompilerParams(
            dimension_semantics=("parallel",),
            vmem_limit_bytes=vmem_limit_bytes,
        ),
    )(x2, gamma_scaled, *consts)

    return out.reshape(orig_shape)


def _reference(x, gamma):
    xf = x.astype(jnp.float32)
    dim = gamma.shape[-1]
    norm = jnp.maximum(jnp.sqrt(jnp.sum(xf * xf, axis=-1, keepdims=True)), 1e-12)
    y = (xf / norm) * gamma.astype(jnp.float32) * (dim ** 0.5)
    return y.astype(x.dtype)


def _check(name, out, ref, atol, rtol):
    o = out.astype(jnp.float32)
    r = ref.astype(jnp.float32)
    err = jnp.abs(o - r)
    bound = atol + rtol * jnp.abs(r)
    assert bool(jnp.all(err <= bound)), f"{name}: max abs err {float(jnp.max(err))}"


if __name__ == "__main__":
    key = jax.random.PRNGKey(0)
    k1, k2, k3, kg1, kg2 = jax.random.split(key, 5)

    # 1) bf16 input, H*D = 128 (block-diagonal MXU reduction, single bf16 pass).
    B, L, H, D = 2, 8, 4, 32
    x1 = jax.random.normal(k1, (B, L, H, D), dtype=jnp.float32).astype(jnp.bfloat16)
    g1 = (jnp.ones((H, D), jnp.float32)
          + 0.01 * jax.random.normal(kg1, (H, D), dtype=jnp.float32))
    o1 = jax.block_until_ready(multi_head_rms_norm(x1, g1))
    assert o1.shape == x1.shape and o1.dtype == x1.dtype
    _check("bf16/blockdiag", o1, _reference(x1, g1), atol=3e-2, rtol=2e-2)

    # 2) f32 input, same shape (hi/lo MXU path, multi-step grid).
    x2 = jax.random.normal(k2, (B, L, H, D), dtype=jnp.float32)
    o2 = jax.block_until_ready(multi_head_rms_norm(x2, g1))
    assert o2.shape == x2.shape and o2.dtype == x2.dtype
    _check("f32/blockdiag", o2, _reference(x2, g1), atol=1e-4, rtol=1e-3)

    # 3) bf16 input, H*D = 512 (reduce + broadcast path).
    B2, L2, H2, D2 = 2, 8, 8, 64
    x3 = jax.random.normal(k3, (B2, L2, H2, D2), dtype=jnp.float32).astype(jnp.bfloat16)
    g3 = (jnp.ones((H2, D2), jnp.float32)
          + 0.01 * jax.random.normal(kg2, (H2, D2), dtype=jnp.float32))
    o3 = jax.block_until_ready(multi_head_rms_norm(x3, g3))
    assert o3.shape == x3.shape and o3.dtype == x3.dtype
    _check("bf16/reduce", o3, _reference(x3, g3), atol=3e-2, rtol=2e-2)

    print("KERNEL_OK")
</pallas_src>

<mosaic_0001>
module attributes {stable_mosaic.version = 11 : i64} {
  func.func @_mh_rmsnorm_blockdiag_kernel(%arg0: i32, %arg1: memref<16x128xbf16, #tpu.memory_space<vmem>>, %arg2: memref<1x128xf32, #tpu.memory_space<vmem>>, %arg3: memref<128x128xbf16, #tpu.memory_space<vmem>>, %arg4: memref<16x128xbf16, #tpu.memory_space<vmem>>) attributes {dimension_semantics = [#tpu.dimension_semantics<parallel>], iteration_bounds = array<i64: 1>, scalar_prefetch = 0 : i64, scratch_operands = 0 : i64, tpu.core_type = #tpu.core_type<tc>, window_params = [{transform_indices = @transform_0, window_bounds = array<i64: 16, 128>}, {pipeline_mode = #tpu.pipeline_mode<synchronous>, transform_indices = @transform_1, window_bounds = array<i64: 1, 128>}, {pipeline_mode = #tpu.pipeline_mode<synchronous>, transform_indices = @transform_2, window_bounds = array<i64: 128, 128>}, {transform_indices = @transform_3, window_bounds = array<i64: 16, 128>}]} {
    %c0 = arith.constant 0 : index
    %c0_0 = arith.constant 0 : index
    %0 = vector.load %arg3[%c0, %c0_0] : memref<128x128xbf16, #tpu.memory_space<vmem>>, vector<128x128xbf16>
    %c0_1 = arith.constant 0 : index
    %c0_2 = arith.constant 0 : index
    %1 = vector.load %arg1[%c0_1, %c0_2] : memref<16x128xbf16, #tpu.memory_space<vmem>>, vector<16x128xbf16>
    %2 = arith.mulf %1, %1 : vector<16x128xbf16>
    %cst = arith.constant dense<0.000000e+00> : vector<16x128xf32>
    %3 = tpu.matmul %2, %0, %cst {dimension_numbers = #tpu.dot_dimension_numbers<[1], [0], [0], [1], [0, 0, 1, 1], [], []>} : vector<16x128xbf16>, vector<128x128xbf16>, vector<16x128xf32> -> vector<16x128xf32>
    %cst_3 = arith.constant 1.000000e-24 : f32
    %4 = vector.broadcast %cst_3 : f32 to vector<16x128xf32>
    %5 = arith.maximumf %3, %4 : vector<16x128xf32>
    %6 = math.rsqrt %5 : vector<16x128xf32>
    %c0_4 = arith.constant 0 : index
    %c0_5 = arith.constant 0 : index
    %7 = vector.load %arg1[%c0_4, %c0_5] : memref<16x128xbf16, #tpu.memory_space<vmem>>, vector<16x128xbf16>
    %8 = arith.extf %7 : vector<16x128xbf16> to vector<16x128xf32>
    %c0_6 = arith.constant 0 : index
    %c0_7 = arith.constant 0 : index
    %9 = vector.load %arg2[%c0_6, %c0_7] : memref<1x128xf32, #tpu.memory_space<vmem>>, vector<1x128xf32>
    %10 = vector.broadcast %9 : vector<1x128xf32> to vector<16x128xf32>
    %11 = arith.mulf %6, %10 : vector<16x128xf32>
    %12 = arith.mulf %8, %11 : vector<16x128xf32>
    %13 = arith.truncf %12 : vector<16x128xf32> to vector<16x128xbf16>
    %c0_8 = arith.constant 0 : index
    %c0_9 = arith.constant 0 : index
    %14 = vector.load %arg4[%c0_8, %c0_9] : memref<16x128xbf16, #tpu.memory_space<vmem>>, vector<16x128xbf16>
    tpu.vector_store %arg4[%c0_8, %c0_9], %13 {strides = array<i32>} : memref<16x128xbf16, #tpu.memory_space<vmem>>, vector<16x128xbf16>,
    return
  }
  func.func @transform_0(%arg0: i32) -> (i32, i32) {
    %c0_i32 = arith.constant 0 : i32
    %c0_i32_0 = arith.constant 0 : i32
    return %arg0, %c0_i32 : i32, i32
  }
  func.func @transform_1(%arg0: i32) -> (i32, i32) {
    %c0_i32 = arith.constant 0 : i32
    %c0_i32_0 = arith.constant 0 : i32
    %c0_i32_1 = arith.constant 0 : i32
    return %c0_i32, %c0_i32_0 : i32, i32
  }
  func.func @transform_2(%arg0: i32) -> (i32, i32) {
    %c0_i32 = arith.constant 0 : i32
    %c0_i32_0 = arith.constant 0 : i32
    %c0_i32_1 = arith.constant 0 : i32
    return %c0_i32, %c0_i32_0 : i32, i32
  }
  func.func @transform_3(%arg0: i32) -> (i32, i32) {
    %c0_i32 = arith.constant 0 : i32
    %c0_i32_0 = arith.constant 0 : i32
    return %arg0, %c0_i32 : i32, i32
  }
}

</mosaic_0001>

<llo_original>
// kernel: tpu_custom_call.1
$region0: #{tpu_custom_call.1}
  #allocation0 [shape = 'u32[]', space=smem, size = 0x4, offset = 0x4, fixed_abs, tag = 'smem constant byte address 0x4 - core index']
  #allocation1 [shape = 'u32[72,128]{1,0:T(1,128)}', space=vmem, size = 0x9000, scoped, tag = 'internal scratch']
  %s0 = inlined_call_operand.hbm [shape: bf16[16,128], index: 0, kind: input, shape index: {}]
  %s1 = inlined_call_operand.hbm [shape: f32[1,128], index: 1, kind: input, shape index: {}]
  %s2 = inlined_call_operand.hbm [shape: bf16[128,128], index: 2, kind: input, shape index: {}]
  %s3 = inlined_call_operand.hbm [shape: bf16[16,128], index: 3, kind: output, shape index: {}]
  %s4 = sld [smem:[#allocation0]]
  $region34: #{tpu_custom_call.1} parent=0
    _
  %s6 = ssub.s32 1, %s4
  %s7 = scalar_select 0, %s6, %s4
  $region1: #{tpu_custom_call.1} parent=0
    #allocation2 [shape = 'u8[4096]{0}', space=vmem, size = 0x1000, scoped, tag = 'input window, operand 0, single buffered']
    #allocation3 [shape = 's32[1]{0}', space=sflag, size = 0x4, scoped, tag = 'scoped memory for tpu_custom_call.1']
    #allocation4 [shape = 's32[1]{0}', space=sflag, size = 0x4, scoped, tag = 'scoped memory for tpu_custom_call.1']
    #allocation5 [shape = 'u8[512]{0}', space=vmem, size = 0x400, scoped, tag = 'input window, operand 1, single buffered']
    #allocation6 [shape = 's32[1]{0}', space=sflag, size = 0x4, scoped, tag = 'scoped memory for tpu_custom_call.1']
    #allocation7 [shape = 'u8[32768]{0}', space=vmem, size = 0x8000, scoped, tag = 'input window, operand 2, single buffered']
    #allocation8 [shape = 'u8[4096]{0}', space=vmem, size = 0x1000, scoped, tag = 'output window, operand 0, single buffered']
    %8 = vsyncpa [#allocation3], 0
    %9 = vsyncpa [#allocation6], 0
    %10 = vsyncpa [#allocation4], 0
    // Predicated region
    $region2: #{tpu_custom_call.1} parent=1 // pred_check
      _
    $region3: #{tpu_custom_call.1} parent=1 // pred_check_branch
      %12 = sbr.rel (0) target = $region5
    $region4: #{tpu_custom_call.1} parent=1 // pred_region
      %14 = vsyncadd [#allocation3], 0
      %s15 = sshll.u32 %s0, 4
      %s16 = int_to_ptr.hbm [resolvable:$true] %s15
      %s17 = sshll.u32 [#allocation2], 4
      %s18 = int_to_ptr.vmem [resolvable:$true] %s17
      %23 = dma.hbm_to_vmem [thread:$0]  %s16, 128, %s18, [#allocation3], 64, 64, 4
    $region5: #{tpu_custom_call.1} parent=1 // pred_fallthru
      _
    // Predicated region
    $region6: #{tpu_custom_call.1} parent=1 // pred_check
      _
    $region7: #{tpu_custom_call.1} parent=1 // pred_check_branch
      %25 = sbr.rel (0) target = $region9
    $region8: #{tpu_custom_call.1} parent=1 // pred_region
      %27 = vsyncadd [#allocation6], 0
      %s29 = sshll.u32 %s1, 4
      %s30 = int_to_ptr.hbm [resolvable:$true] %s29
      %s31 = sshll.u32 [#allocation5], 4
      %s32 = int_to_ptr.vmem [resolvable:$true] %s31
      %34 = dma.hbm_to_vmem [thread:$0]  %s30, 16, %s32, [#allocation6]
    $region9: #{tpu_custom_call.1} parent=1 // pred_fallthru
      _
    // Predicated region
    $region10: #{tpu_custom_call.1} parent=1 // pred_check
      _
    $region11: #{tpu_custom_call.1} parent=1 // pred_check_branch
      %36 = sbr.rel (0) target = $region13
    $region12: #{tpu_custom_call.1} parent=1 // pred_region
      %38 = vsyncadd [#allocation6], 0
      %s39 = sshll.u32 %s2, 4
      %s40 = int_to_ptr.hbm [resolvable:$true] %s39
      %s41 = sshll.u32 [#allocation7], 4
      %s42 = int_to_ptr.vmem [resolvable:$true] %s41
      %47 = dma.hbm_to_vmem [thread:$0]  %s40, 1024, %s42, [#allocation6], 64, 64, 4
    $region13: #{tpu_custom_call.1} parent=1 // pred_fallthru
      _
    // Predicated region
    $region14: #{tpu_custom_call.1} parent=1 // pred_check
      _
    $region15: #{tpu_custom_call.1} parent=1 // pred_check_branch
      %49 = sbr.rel (0) target = $region17
    $region16: #{tpu_custom_call.1} parent=1 // pred_region
      %51 = dma.done [#allocation3], 128
    $region17: #{tpu_custom_call.1} parent=1 // pred_fallthru
      _
    // Predicated region
    $region18: #{tpu_custom_call.1} parent=1 // pred_check
      _
    $region19: #{tpu_custom_call.1} parent=1 // pred_check_branch
      %53 = sbr.rel (0) target = $region21
    $region20: #{tpu_custom_call.1} parent=1 // pred_region
      %55 = dma.done [#allocation6], 16
    $region21: #{tpu_custom_call.1} parent=1 // pred_fallthru
      _
    // Predicated region
    $region22: #{tpu_custom_call.1} parent=1 // pred_check
      _
    $region23: #{tpu_custom_call.1} parent=1 // pred_check_branch
      %57 = sbr.rel (0) target = $region25
    $region24: #{tpu_custom_call.1} parent=1 // pred_region
      %59 = dma.done [#allocation6], 1024
    $region25: #{tpu_custom_call.1} parent=1 // pred_fallthru
      _
    %v60 = vld [vmem:[#allocation7] sm:$0xf]
    %v61 = vld [vmem:[#allocation7 + $0x4] sm:$0xf]
    %v62 = vld [vmem:[#allocation7 + $0x8] sm:$0xf]
    %v63 = vld [vmem:[#allocation7 + $0xc] sm:$0xf]
    %v64 = vld [vmem:[#allocation7 + $0x10] sm:$0xf]
    %v65 = vld [vmem:[#allocation7 + $0x14] sm:$0xf]
    %v66 = vld [vmem:[#allocation7 + $0x18] sm:$0xf]
    %v67 = vld [vmem:[#allocation7 + $0x1c] sm:$0xf]
    %v68 = vld [vmem:[#allocation7 + $0x20] sm:$0xf]
    %v69 = vld [vmem:[#allocation7 + $0x24] sm:$0xf]
    %v70 = vld [vmem:[#allocation7 + $0x28] sm:$0xf]
    %v71 = vld [vmem:[#allocation7 + $0x2c] sm:$0xf]
    %v72 = vld [vmem:[#allocation7 + $0x30] sm:$0xf]
    %v73 = vld [vmem:[#allocation7 + $0x34] sm:$0xf]
    %v74 = vld [vmem:[#allocation7 + $0x38] sm:$0xf]
    %v75 = vld [vmem:[#allocation7 + $0x3c] sm:$0xf]
    %v76 = vld [vmem:[#allocation2] sm:$0xf]
    %v77 = vld [vmem:[#allocation2 + $0x4] sm:$0xf]
    %v78 = vunpack.c.l.bf16 %v76
    %v79 = vunpack.c.l.bf16 %v77
    %v80 = vmul.f32 %v78, %v78
    %v81 = vmul.f32 %v79, %v79
    %v82 = vpack.c.bf16 %v81, %v80
    %v99 = vunpack.c.l.b16 %v60
    %v100 = vunpack.c.l.b16 %v61
    %v101 = vunpack.c.l.b16 %v62
    %v102 = vunpack.c.l.b16 %v63
    %v103 = vunpack.c.l.b16 %v64
    %v104 = vunpack.c.l.b16 %v65
    %v105 = vunpack.c.l.b16 %v66
    %v106 = vunpack.c.l.b16 %v67
    %v107 = vunpack.c.l.b16 %v68
    %v108 = vunpack.c.l.b16 %v69
    %v109 = vunpack.c.l.b16 %v70
    %v110 = vunpack.c.l.b16 %v71
    %v111 = vunpack.c.l.b16 %v72
    %v112 = vunpack.c.l.b16 %v73
    %v113 = vunpack.c.l.b16 %v74
    %v114 = vunpack.c.l.b16 %v75
    %v115 = vpack.c.b16 %v100, %v99
    %v116 = vpack.c.b16 %v102, %v101
    %v117 = vpack.c.b16 %v104, %v103
    %v118 = vpack.c.b16 %v106, %v105
    %v119 = vpack.c.b16 %v108, %v107
    %v120 = vpack.c.b16 %v110, %v109
    %v121 = vpack.c.b16 %v112, %v111
    %v122 = vpack.c.b16 %v114, %v113
    %131 = vmatpush.bf16.msra.mxu0 %v122
    %132 = vmatpush.bf16.msra.mxu0 %v121
    %133 = vmatpush.bf16.msra.mxu0 %v120
    %134 = vmatpush.bf16.msra.mxu0 %v119
    %135 = vmatpush.bf16.msra.mxu0 %v118
    %136 = vmatpush.bf16.msra.mxu0 %v117
    %137 = vmatpush.bf16.msra.mxu0 %v116
    %138 = vmatpush.bf16.msra.mxu0 %v115
    %139 = vmatmul.bf16.gmra.mxu0 %v82
    %v140 = vpop.f32.mrf.mxu0
    %v141 = vadd.f32 0.0, %v140
    %v142 = vpop.f32.mrf.mxu0
    %v143 = vadd.f32 0.0, %v142
    %144 = vdwg.mxu0
    %v145 = vmax.f32 %v141, 1e-24
    %v146 = vmax.f32 %v143, 1e-24
    %v147 = vrsqrt.pop %v145
    %v148 = vmul.f32 %v147, %v145
    %v149 = vmul.f32 %v148, %v147
    %v150 = vmul.f32 0.5, %v149
    %v151 = vsub.f32 1.5, %v150
    %v152 = vmul.f32 %v147, %v151
    %vm153 = vweird.f32 %v145
    %vm154 = vweird.f32 %v147
    %vm155 = vmor %vm153, %vm154
    %v156 = vsel %vm155, %v147, %v152
    %v157 = vrsqrt.pop %v146
    %v158 = vmul.f32 %v157, %v146
    %v159 = vmul.f32 %v158, %v157
    %v160 = vmul.f32 0.5, %v159
    %v161 = vsub.f32 1.5, %v160
    %v162 = vmul.f32 %v157, %v161
    %vm163 = vweird.f32 %v146
    %vm164 = vweird.f32 %v157
    %vm165 = vmor %vm163, %vm164
    %v166 = vsel %vm165, %v157, %v162
    %v167 = vld [vmem:[#allocation5] sm:$0x1]
    %v169 = vperm.slane %v167, 0
    %v171 = vmul.f32 %v156, %v169
    %v172 = vmul.f32 %v166, %v169
    %v173 = vmul.f32 %v78, %v171
    %v174 = vmul.f32 %v79, %v172
    %v175 = vpack.c.bf16 %v173, %v173
    %v176 = vpack.c.bf16 %v174, %v174
    %177 = vst [vmem:[#allocation8] sm:$0xf] %v175
    %178 = vst [vmem:[#allocation8 + $0x4] sm:$0xf] %v176
    // Predicated region
    $region26: #{tpu_custom_call.1} parent=1 // pred_check
      _
    $region27: #{tpu_custom_call.1} parent=1 // pred_check_branch
      %180 = sbr.rel (0) target = $region29
    $region28: #{tpu_custom_call.1} parent=1 // pred_region
      %182 = vsyncadd [#allocation4], 0
      %s183 = sshll.u32 [#allocation8], 4
      %s184 = int_to_ptr.vmem [resolvable:$true] %s183
      %s185 = sshll.u32 %s3, 4
      %s186 = int_to_ptr.hbm [resolvable:$true] %s185
      %191 = dma.vmem_to_hbm [thread:$0]  %s184, 128, %s186, [#allocation4], 64, 64, 4
    $region29: #{tpu_custom_call.1} parent=1 // pred_fallthru
      _
    // Predicated region
    $region30: #{tpu_custom_call.1} parent=1 // pred_check
      _
    $region31: #{tpu_custom_call.1} parent=1 // pred_check_branch
      %193 = sbr.rel (0) target = $region33
    $region32: #{tpu_custom_call.1} parent=1 // pred_region
      %195 = dma.done [#allocation4], 128
    $region33: #{tpu_custom_call.1} parent=1 // pred_fallthru
      _
    %196 = vsyncpa [#allocation3], 1
    %197 = vsyncpa [#allocation6], 1
    %198 = vsyncpa [#allocation4], 1

</llo_original>
